<compile_context>
chip_gen: v6e
topology: v6e:2x2x1
jax: 0.10.0
libtpu: 0.0.40
codegen_flags: <defaults>
</compile_context>

<pallas_src>
import functools

import numpy as np
import jax
import jax.numpy as jnp
from jax import lax
from jax.experimental import pallas as pl
from jax.experimental.pallas import tpu as pltpu


_FEAT_DTYPE = jnp.bfloat16  # phase-1 feature output dtype / phase-2 MXU input dtype

# Contract the last axis of both operands: a @ b.T without materializing b.T.
_DNT = (((1,), (1,)), ((), ()))


# ---------------------------------------------------------------------------
# Kernels
# ---------------------------------------------------------------------------

def _proj_kernel(scale_ref, text_ref, image_ref, pose_ref,
                 w1_ref, b1_ref, w2_ref, b2_ref, w3_ref, b3_ref,
                 tf_ref, imf_ref, pf_ref):
    # scale = sqrt(exp(logit_scale)); folding it into each feature matrix
    # replaces three B*B elementwise multiplies with three B*D multiplies.
    scale = scale_ref[0]

    def proj_norm(x_ref, w_ref, b_ref):
        # Weights stay in PyTorch (out_dim, in_dim) layout; contract the last
        # axes on the MXU instead of paying an XLA transpose per call.
        f = lax.dot_general(x_ref[...], w_ref[...], dimension_numbers=_DNT,
                            preferred_element_type=jnp.float32) + b_ref[...]
        sq = jnp.sum(f * f, axis=1, keepdims=True)
        # F.normalize(p=2, dim=1): x / max(||x||, 1e-12)
        #   == x * rsqrt(max(||x||^2, 1e-24))   (EUP rsqrt, no divide)
        inv = lax.rsqrt(jnp.maximum(sq, 1e-24))
        # bf16 features: near-peak MXU in phase 2 + half the HBM/VMEM traffic.
        return (f * (inv * scale)).astype(_FEAT_DTYPE)

    tf_ref[...] = proj_norm(text_ref, w1_ref, b1_ref)
    imf_ref[...] = proj_norm(image_ref, w2_ref, b2_ref)
    pf_ref[...] = proj_norm(pose_ref, w3_ref, b3_ref)


def _logits_resident_kernel(path_ref, image_ref, text_ref,
                            tp_ref, pt_ref, ip_ref, pi_ref, it_ref, ti_ref,
                            *, tm, tn):
    # Features are resident in VMEM (constant index map); slice row/col tiles
    # in-kernel so each feature is DMA'd from HBM exactly once for the grid.
    i = pl.program_id(0)
    j = pl.program_id(1)
    r = pl.multiple_of(i * tm, tm)
    c = pl.multiple_of(j * tn, tn)

    p_i = path_ref[pl.ds(r, tm), :]
    im_i = image_ref[pl.ds(r, tm), :]
    t_i = text_ref[pl.ds(r, tm), :]
    p_j = path_ref[pl.ds(c, tn), :]
    im_j = image_ref[pl.ds(c, tn), :]
    t_j = text_ref[pl.ds(c, tn), :]

    def dot_t(a, b):
        return lax.dot_general(a, b, dimension_numbers=_DNT,
                               preferred_element_type=jnp.float32)

    # logit_scale was folded into the features in phase 1.  "Transposed"
    # outputs use swapped operands on the MXU (no XLU transposes of BxB tiles).
    tp_ref[...] = dot_t(t_i, p_j)     # logits_per_text_path
    pt_ref[...] = dot_t(p_i, t_j)     # logits_per_path_text
    ip_ref[...] = dot_t(im_i, p_j)    # logits_per_images_path
    pi_ref[...] = dot_t(p_i, im_j)    # logits_per_path_images
    it_ref[...] = dot_t(im_i, t_j)    # logits_per_image_text
    ti_ref[...] = dot_t(t_i, im_j)    # logits_per_text_image


def _logits_tiled_kernel(path_i_ref, image_i_ref, text_i_ref,
                         path_j_ref, image_j_ref, text_j_ref,
                         tp_ref, pt_ref, ip_ref, pi_ref, it_ref, ti_ref):
    # Fallback for very large B where fully-resident features do not fit VMEM.
    def dot_t(a_ref, b_ref):
        return lax.dot_general(a_ref[...], b_ref[...], dimension_numbers=_DNT,
                               preferred_element_type=jnp.float32)

    tp_ref[...] = dot_t(text_i_ref, path_j_ref)
    pt_ref[...] = dot_t(path_i_ref, text_j_ref)
    ip_ref[...] = dot_t(image_i_ref, path_j_ref)
    pi_ref[...] = dot_t(path_i_ref, image_j_ref)
    it_ref[...] = dot_t(image_i_ref, text_j_ref)
    ti_ref[...] = dot_t(text_i_ref, image_j_ref)


# ---------------------------------------------------------------------------
# Tiling / VMEM helpers
# ---------------------------------------------------------------------------

def _round_up(x, m):
    return ((x + m - 1) // m) * m


def _sublane_tile(b):
    """Row tile: multiple of 8 (capped at 256); >=2 grid points when feasible
    so both v7x TensorCores stay busy."""
    for t in (256, 128):
        if b > t and b % t == 0:
            return t
    if b >= 32 and b % 32 == 0:
        return b // 2        # still a multiple of 16 (bf16 sublane packing)
    return b


def _lane_tile(b):
    """Column tile: multiple of 128 (unmasked vst, lane-dense) or the full dim."""
    for t in (256, 128):
        if b % t == 0:
            return t
    return b


def _vmem_limit(nbytes):
    # Explicit scoped-VMEM request: at least 32 MiB (covers v5e's 16 MiB
    # default), never above v7x's 64 MiB physical.
    return int(min(max(nbytes + (4 << 20), 32 << 20), 64 << 20))


# ---------------------------------------------------------------------------
# Wrapper
# ---------------------------------------------------------------------------

def clipp_forward(text_embed, image_embed, pose_embed, params):
    """params: dict with w1,b1,w2,b2,w3,b3 (PyTorch layout) and logit_scale."""
    B, in_dim = text_embed.shape
    path_dim = pose_embed.shape[1]
    D = params["w1"].shape[0]  # output_dim; weights stay in (out, in) layout

    # Pad ragged large batches to a multiple of 128 (lane-dense logit tiles,
    # bounded VMEM); padded rows are sliced off at the end.
    Bp = _round_up(B, 128) if (B > 256 and B % 128 != 0) else B
    if Bp != B:
        pad = ((0, Bp - B), (0, 0))
        text_embed = jnp.pad(text_embed, pad)
        image_embed = jnp.pad(image_embed, pad)
        pose_embed = jnp.pad(pose_embed, pad)

    w1, w2, w3 = params["w1"], params["w2"], params["w3"]
    b1 = params["b1"].reshape(1, D)
    b2 = params["b2"].reshape(1, D)
    b3 = params["b3"].reshape(1, D)
    # Single scalar exp hoisted to the wrapper; kernel sees sqrt(exp(ls)).
    scale = jnp.exp(0.5 * params["logit_scale"].astype(jnp.float32)).reshape(1)

    def row_spec(rows, cols):
        return pl.BlockSpec((rows, cols), lambda i: (i, 0))

    def whole(shape):
        return pl.BlockSpec(shape, lambda i, _nd=len(shape): (0,) * _nd)

    # ---------------- phase 1: projection + normalize + scale-fold ----------
    tb = _sublane_tile(Bp)
    nb = Bp // tb
    feat_shape = jax.ShapeDtypeStruct((Bp, D), _FEAT_DTYPE)

    vmem1 = (2 * 4 * (2 * tb * in_dim + tb * path_dim        # inputs (dbl-buf)
                      + 2 * D * in_dim + D * path_dim + 3 * D)  # weights/biases
             + 2 * 2 * 3 * tb * D)                            # bf16 outputs

    text_f, image_f, path_f = pl.pallas_call(
        _proj_kernel,
        out_shape=(feat_shape, feat_shape, feat_shape),
        grid_spec=pltpu.PrefetchScalarGridSpec(
            num_scalar_prefetch=0,
            grid=(nb,),
            in_specs=[
                pl.BlockSpec(memory_space=pltpu.MemorySpace.SMEM),  # scale
                row_spec(tb, in_dim),                               # text
                row_spec(tb, in_dim),                               # image
                row_spec(tb, path_dim),                             # pose
                whole((D, in_dim)), whole((1, D)),                  # fc1
                whole((D, in_dim)), whole((1, D)),                  # fc2
                whole((D, path_dim)), whole((1, D)),                # fc3
            ],
            out_specs=[row_spec(tb, D), row_spec(tb, D), row_spec(tb, D)],
        ),
        compiler_params=pltpu.CompilerParams(
            dimension_semantics=("parallel",),
            vmem_limit_bytes=_vmem_limit(vmem1)),
    )(scale, text_embed, image_embed, pose_embed, w1, b1, w2, b2, w3, b3)

    # ---------------- phase 2: six (B, B) logit matrices, 2-D tiled ---------
    tm = _sublane_tile(Bp)
    tn = _lane_tile(Bp)
    gi, gj = Bp // tm, Bp // tn
    logits_shape = jax.ShapeDtypeStruct((Bp, Bp), jnp.float32)
    out_blk = pl.BlockSpec((tm, tn), lambda i, j: (i, j))

    feat_bytes = 3 * Bp * D * 2                 # one copy of all bf16 features
    out_tile_bytes = 2 * 6 * tm * tn * 4        # double-buffered f32 outputs
    resident_bytes = 2 * feat_bytes + out_tile_bytes
    use_resident = resident_bytes <= (40 << 20)

    if use_resident:
        # Each feature passed ONCE, resident across the whole grid.
        feat_spec = pl.BlockSpec((Bp, D), lambda i, j: (0, 0))
        kernel = functools.partial(_logits_resident_kernel, tm=tm, tn=tn)
        in_specs = [feat_spec, feat_spec, feat_spec]
        args = (path_f, image_f, text_f)
        vmem2 = resident_bytes
    else:
        # Fallback: tiled row/column fetches (still bf16, lane-dense outputs).
        row_blk = pl.BlockSpec((tm, D), lambda i, j: (i, 0))
        col_blk = pl.BlockSpec((tn, D), lambda i, j: (j, 0))
        kernel = _logits_tiled_kernel
        in_specs = [row_blk, row_blk, row_blk, col_blk, col_blk, col_blk]
        args = (path_f, image_f, text_f, path_f, image_f, text_f)
        vmem2 = 2 * 3 * (tm + tn) * D * 2 + out_tile_bytes

    outs = pl.pallas_call(
        kernel,
        out_shape=(logits_shape,) * 6,
        grid_spec=pltpu.PrefetchScalarGridSpec(
            num_scalar_prefetch=0,
            grid=(gi, gj),
            in_specs=in_specs,
            out_specs=[out_blk] * 6,
        ),
        compiler_params=pltpu.CompilerParams(
            dimension_semantics=("parallel", "parallel"),
            vmem_limit_bytes=_vmem_limit(vmem2)),
    )(*args)

    if Bp != B:
        outs = tuple(o[:B, :B] for o in outs)
    return outs


# ---------------------------------------------------------------------------
# Params / pure-JAX reference
# ---------------------------------------------------------------------------

def init_params(key, input_dim, path_dim, output_dim):
    k1, k2, k3, k4, k5, k6 = jax.random.split(key, 6)
    s_in = 1.0 / jnp.sqrt(input_dim)
    s_p = 1.0 / jnp.sqrt(path_dim)
    return {
        "w1": jax.random.uniform(k1, (output_dim, input_dim), jnp.float32, -s_in, s_in),
        "b1": jax.random.uniform(k2, (output_dim,), jnp.float32, -s_in, s_in),
        "w2": jax.random.uniform(k3, (output_dim, input_dim), jnp.float32, -s_in, s_in),
        "b2": jax.random.uniform(k4, (output_dim,), jnp.float32, -s_in, s_in),
        "w3": jax.random.uniform(k5, (output_dim, path_dim), jnp.float32, -s_p, s_p),
        "b3": jax.random.uniform(k6, (output_dim,), jnp.float32, -s_p, s_p),
        "logit_scale": jnp.array(np.log(1.0 / 0.07), jnp.float32),
    }


def _reference(text_embed, image_embed, pose_embed, params):
    def lin(x, w, b):
        return x @ w.T + b

    def norm(x):
        n = jnp.sqrt(jnp.sum(x * x, axis=1, keepdims=True))
        return x / jnp.maximum(n, 1e-12)

    tf = norm(lin(text_embed, params["w1"], params["b1"]))
    imf = norm(lin(image_embed, params["w2"], params["b2"]))
    pf = norm(lin(pose_embed, params["w3"], params["b3"]))
    s = jnp.exp(params["logit_scale"])
    pi = pf @ imf.T * s
    pt = pf @ tf.T * s
    it = imf @ tf.T * s
    return (pt.T, pt, pi.T, pi, it, it.T)


if __name__ == "__main__":
    B, input_dim, path_dim, output_dim = 8, 32, 16, 32
    key = jax.random.PRNGKey(0)
    k_t, k_i, k_p, k_w = jax.random.split(key, 4)

    text_embed = jax.random.normal(k_t, (B, input_dim), jnp.float32)
    image_embed = jax.random.normal(k_i, (B, input_dim), jnp.float32)
    pose_embed = jax.random.normal(k_p, (B, path_dim), jnp.float32)
    params = init_params(k_w, input_dim, path_dim, output_dim)

    outs = clipp_forward(text_embed, image_embed, pose_embed, params)
    outs = jax.block_until_ready(outs)

    refs = _reference(text_embed, image_embed, pose_embed, params)
    for o, r in zip(outs, refs):
        assert o.shape == (B, B)
        # Features travel in bf16 between the two passes (perf review), so the
        # logits are bf16-accurate (~0.4% relative); f32 accumulation on MXU.
        assert jnp.allclose(o, r, atol=1e-1, rtol=1e-2), float(jnp.max(jnp.abs(o - r)))

    print("KERNEL_OK")
</pallas_src>

<mosaic_0001>
module attributes {stable_mosaic.version = 11 : i64} {
  func.func @_proj_kernel(%arg0: i32, %arg1: memref<1xf32, #tpu.memory_space<smem>>, %arg2: memref<8x32xf32, #tpu.memory_space<vmem>>, %arg3: memref<8x32xf32, #tpu.memory_space<vmem>>, %arg4: memref<8x16xf32, #tpu.memory_space<vmem>>, %arg5: memref<32x32xf32, #tpu.memory_space<vmem>>, %arg6: memref<1x32xf32, #tpu.memory_space<vmem>>, %arg7: memref<32x32xf32, #tpu.memory_space<vmem>>, %arg8: memref<1x32xf32, #tpu.memory_space<vmem>>, %arg9: memref<32x16xf32, #tpu.memory_space<vmem>>, %arg10: memref<1x32xf32, #tpu.memory_space<vmem>>, %arg11: memref<8x32xbf16, #tpu.memory_space<vmem>>, %arg12: memref<8x32xbf16, #tpu.memory_space<vmem>>, %arg13: memref<8x32xbf16, #tpu.memory_space<vmem>>) attributes {dimension_semantics = [#tpu.dimension_semantics<parallel>], iteration_bounds = array<i64: 1>, scalar_prefetch = 0 : i64, scratch_operands = 0 : i64, tpu.core_type = #tpu.core_type<tc>, window_params = [{transform_indices = @transform_0, window_bounds = array<i64: 1>}, {transform_indices = @transform_1, window_bounds = array<i64: 8, 32>}, {transform_indices = @transform_2, window_bounds = array<i64: 8, 32>}, {transform_indices = @transform_3, window_bounds = array<i64: 8, 16>}, {pipeline_mode = #tpu.pipeline_mode<synchronous>, transform_indices = @transform_4, window_bounds = array<i64: 32, 32>}, {pipeline_mode = #tpu.pipeline_mode<synchronous>, transform_indices = @transform_5, window_bounds = array<i64: 1, 32>}, {pipeline_mode = #tpu.pipeline_mode<synchronous>, transform_indices = @transform_6, window_bounds = array<i64: 32, 32>}, {pipeline_mode = #tpu.pipeline_mode<synchronous>, transform_indices = @transform_7, window_bounds = array<i64: 1, 32>}, {pipeline_mode = #tpu.pipeline_mode<synchronous>, transform_indices = @transform_8, window_bounds = array<i64: 32, 16>}, {pipeline_mode = #tpu.pipeline_mode<synchronous>, transform_indices = @transform_9, window_bounds = array<i64: 1, 32>}, {transform_indices = @transform_10, window_bounds = array<i64: 8, 32>}, {transform_indices = @transform_11, window_bounds = array<i64: 8, 32>}, {transform_indices = @transform_12, window_bounds = array<i64: 8, 32>}]} {
    %c0 = arith.constant 0 : index
    %0 = memref.load %arg1[%c0] : memref<1xf32, #tpu.memory_space<smem>>
    %c0_0 = arith.constant 0 : index
    %c0_1 = arith.constant 0 : index
    %1 = vector.load %arg2[%c0_0, %c0_1] : memref<8x32xf32, #tpu.memory_space<vmem>>, vector<8x32xf32>
    %c0_2 = arith.constant 0 : index
    %c0_3 = arith.constant 0 : index
    %2 = vector.load %arg5[%c0_2, %c0_3] : memref<32x32xf32, #tpu.memory_space<vmem>>, vector<32x32xf32>
    %cst = arith.constant dense<0.000000e+00> : vector<8x32xf32>
    %3 = tpu.matmul %1, %2, %cst {dimension_numbers = #tpu.dot_dimension_numbers<[1], [1], [0], [0], [0, 0, 1, 0], [], []>} : vector<8x32xf32>, vector<32x32xf32>, vector<8x32xf32> -> vector<8x32xf32>
    %c0_4 = arith.constant 0 : index
    %c0_5 = arith.constant 0 : index
    %4 = vector.load %arg6[%c0_4, %c0_5] : memref<1x32xf32, #tpu.memory_space<vmem>>, vector<1x32xf32>
    %5 = vector.broadcast %4 : vector<1x32xf32> to vector<8x32xf32>
    %6 = arith.addf %3, %5 : vector<8x32xf32>
    %7 = arith.mulf %6, %6 : vector<8x32xf32>
    %cst_6 = arith.constant dense<0.000000e+00> : vector<8xf32>
    %8 = vector.multi_reduction <add>, %7, %cst_6 [1] : vector<8x32xf32> to vector<8xf32>
    %9 = vector.shape_cast %8 : vector<8xf32> to vector<8x1xf32>
    %cst_7 = arith.constant 1.000000e-24 : f32
    %10 = vector.broadcast %cst_7 : f32 to vector<8x1xf32>
    %11 = arith.maximumf %9, %10 : vector<8x1xf32>
    %12 = math.rsqrt %11 : vector<8x1xf32>
    %13 = vector.broadcast %0 : f32 to vector<8x1xf32>
    %14 = arith.mulf %12, %13 : vector<8x1xf32>
    %15 = vector.broadcast %14 : vector<8x1xf32> to vector<8x32xf32>
    %16 = arith.mulf %6, %15 : vector<8x32xf32>
    %17 = arith.truncf %16 : vector<8x32xf32> to vector<8x32xbf16>
    %c0_8 = arith.constant 0 : index
    %c0_9 = arith.constant 0 : index
    %18 = vector.load %arg11[%c0_8, %c0_9] : memref<8x32xbf16, #tpu.memory_space<vmem>>, vector<8x32xbf16>
    tpu.vector_store %arg11[%c0_8, %c0_9], %17 {strides = array<i32>} : memref<8x32xbf16, #tpu.memory_space<vmem>>, vector<8x32xbf16>,
    %c0_10 = arith.constant 0 : index
    %c0_11 = arith.constant 0 : index
    %19 = vector.load %arg3[%c0_10, %c0_11] : memref<8x32xf32, #tpu.memory_space<vmem>>, vector<8x32xf32>
    %c0_12 = arith.constant 0 : index
    %c0_13 = arith.constant 0 : index
    %20 = vector.load %arg7[%c0_12, %c0_13] : memref<32x32xf32, #tpu.memory_space<vmem>>, vector<32x32xf32>
    %cst_14 = arith.constant dense<0.000000e+00> : vector<8x32xf32>
    %21 = tpu.matmul %19, %20, %cst_14 {dimension_numbers = #tpu.dot_dimension_numbers<[1], [1], [0], [0], [0, 0, 1, 0], [], []>} : vector<8x32xf32>, vector<32x32xf32>, vector<8x32xf32> -> vector<8x32xf32>
    %c0_15 = arith.constant 0 : index
    %c0_16 = arith.constant 0 : index
    %22 = vector.load %arg8[%c0_15, %c0_16] : memref<1x32xf32, #tpu.memory_space<vmem>>, vector<1x32xf32>
    %23 = vector.broadcast %22 : vector<1x32xf32> to vector<8x32xf32>
    %24 = arith.addf %21, %23 : vector<8x32xf32>
    %25 = arith.mulf %24, %24 : vector<8x32xf32>
    %cst_17 = arith.constant dense<0.000000e+00> : vector<8xf32>
    %26 = vector.multi_reduction <add>, %25, %cst_17 [1] : vector<8x32xf32> to vector<8xf32>
    %27 = vector.shape_cast %26 : vector<8xf32> to vector<8x1xf32>
    %cst_18 = arith.constant 1.000000e-24 : f32
    %28 = vector.broadcast %cst_18 : f32 to vector<8x1xf32>
    %29 = arith.maximumf %27, %28 : vector<8x1xf32>
    %30 = math.rsqrt %29 : vector<8x1xf32>
    %31 = vector.broadcast %0 : f32 to vector<8x1xf32>
    %32 = arith.mulf %30, %31 : vector<8x1xf32>
    %33 = vector.broadcast %32 : vector<8x1xf32> to vector<8x32xf32>
    %34 = arith.mulf %24, %33 : vector<8x32xf32>
    %35 = arith.truncf %34 : vector<8x32xf32> to vector<8x32xbf16>
    %c0_19 = arith.constant 0 : index
    %c0_20 = arith.constant 0 : index
    %36 = vector.load %arg12[%c0_19, %c0_20] : memref<8x32xbf16, #tpu.memory_space<vmem>>, vector<8x32xbf16>
    tpu.vector_store %arg12[%c0_19, %c0_20], %35 {strides = array<i32>} : memref<8x32xbf16, #tpu.memory_space<vmem>>, vector<8x32xbf16>,
    %c0_21 = arith.constant 0 : index
    %c0_22 = arith.constant 0 : index
    %37 = vector.load %arg4[%c0_21, %c0_22] : memref<8x16xf32, #tpu.memory_space<vmem>>, vector<8x16xf32>
    %c0_23 = arith.constant 0 : index
    %c0_24 = arith.constant 0 : index
    %38 = vector.load %arg9[%c0_23, %c0_24] : memref<32x16xf32, #tpu.memory_space<vmem>>, vector<32x16xf32>
    %cst_25 = arith.constant dense<0.000000e+00> : vector<8x32xf32>
    %39 = tpu.matmul %37, %38, %cst_25 {dimension_numbers = #tpu.dot_dimension_numbers<[1], [1], [0], [0], [0, 0, 1, 0], [], []>} : vector<8x16xf32>, vector<32x16xf32>, vector<8x32xf32> -> vector<8x32xf32>
    %c0_26 = arith.constant 0 : index
    %c0_27 = arith.constant 0 : index
    %40 = vector.load %arg10[%c0_26, %c0_27] : memref<1x32xf32, #tpu.memory_space<vmem>>, vector<1x32xf32>
    %41 = vector.broadcast %40 : vector<1x32xf32> to vector<8x32xf32>
    %42 = arith.addf %39, %41 : vector<8x32xf32>
    %43 = arith.mulf %42, %42 : vector<8x32xf32>
    %cst_28 = arith.constant dense<0.000000e+00> : vector<8xf32>
    %44 = vector.multi_reduction <add>, %43, %cst_28 [1] : vector<8x32xf32> to vector<8xf32>
    %45 = vector.shape_cast %44 : vector<8xf32> to vector<8x1xf32>
    %cst_29 = arith.constant 1.000000e-24 : f32
    %46 = vector.broadcast %cst_29 : f32 to vector<8x1xf32>
    %47 = arith.maximumf %45, %46 : vector<8x1xf32>
    %48 = math.rsqrt %47 : vector<8x1xf32>
    %49 = vector.broadcast %0 : f32 to vector<8x1xf32>
    %50 = arith.mulf %48, %49 : vector<8x1xf32>
    %51 = vector.broadcast %50 : vector<8x1xf32> to vector<8x32xf32>
    %52 = arith.mulf %42, %51 : vector<8x32xf32>
    %53 = arith.truncf %52 : vector<8x32xf32> to vector<8x32xbf16>
    %c0_30 = arith.constant 0 : index
    %c0_31 = arith.constant 0 : index
    %54 = vector.load %arg13[%c0_30, %c0_31] : memref<8x32xbf16, #tpu.memory_space<vmem>>, vector<8x32xbf16>
    tpu.vector_store %arg13[%c0_30, %c0_31], %53 {strides = array<i32>} : memref<8x32xbf16, #tpu.memory_space<vmem>>, vector<8x32xbf16>,
    return
  }
  func.func @transform_0(%arg0: i32) -> i32 {
    %c0_i32 = arith.constant 0 : i32
    %c0_i32_0 = arith.constant 0 : i32
    return %c0_i32 : i32
  }
  func.func @transform_1(%arg0: i32) -> (i32, i32) {
    %c0_i32 = arith.constant 0 : i32
    %c0_i32_0 = arith.constant 0 : i32
    return %arg0, %c0_i32 : i32, i32
  }
  func.func @transform_2(%arg0: i32) -> (i32, i32) {
    %c0_i32 = arith.constant 0 : i32
    %c0_i32_0 = arith.constant 0 : i32
    return %arg0, %c0_i32 : i32, i32
  }
  func.func @transform_3(%arg0: i32) -> (i32, i32) {
    %c0_i32 = arith.constant 0 : i32
    %c0_i32_0 = arith.constant 0 : i32
    return %arg0, %c0_i32 : i32, i32
  }
  func.func @transform_4(%arg0: i32) -> (i32, i32) {
    %c0_i32 = arith.constant 0 : i32
    %c0_i32_0 = arith.constant 0 : i32
    %c0_i32_1 = arith.constant 0 : i32
    return %c0_i32, %c0_i32_0 : i32, i32
  }
  func.func @transform_5(%arg0: i32) -> (i32, i32) {
    %c0_i32 = arith.constant 0 : i32
    %c0_i32_0 = arith.constant 0 : i32
    %c0_i32_1 = arith.constant 0 : i32
    return %c0_i32, %c0_i32_0 : i32, i32
  }
  func.func @transform_6(%arg0: i32) -> (i32, i32) {
    %c0_i32 = arith.constant 0 : i32
    %c0_i32_0 = arith.constant 0 : i32
    %c0_i32_1 = arith.constant 0 : i32
    return %c0_i32, %c0_i32_0 : i32, i32
  }
  func.func @transform_7(%arg0: i32) -> (i32, i32) {
    %c0_i32 = arith.constant 0 : i32
    %c0_i32_0 = arith.constant 0 : i32
    %c0_i32_1 = arith.constant 0 : i32
    return %c0_i32, %c0_i32_0 : i32, i32
  }
  func.func @transform_8(%arg0: i32) -> (i32, i32) {
    %c0_i32 = arith.constant 0 : i32
    %c0_i32_0 = arith.constant 0 : i32
    %c0_i32_1 = arith.constant 0 : i32
    return %c0_i32, %c0_i32_0 : i32, i32
  }
  func.func @transform_9(%arg0: i32) -> (i32, i32) {
    %c0_i32 = arith.constant 0 : i32
    %c0_i32_0 = arith.constant 0 : i32
    %c0_i32_1 = arith.constant 0 : i32
    return %c0_i32, %c0_i32_0 : i32, i32
  }
  func.func @transform_10(%arg0: i32) -> (i32, i32) {
    %c0_i32 = arith.constant 0 : i32
    %c0_i32_0 = arith.constant 0 : i32
    return %arg0, %c0_i32 : i32, i32
  }
  func.func @transform_11(%arg0: i32) -> (i32, i32) {
    %c0_i32 = arith.constant 0 : i32
    %c0_i32_0 = arith.constant 0 : i32
    return %arg0, %c0_i32 : i32, i32
  }
  func.func @transform_12(%arg0: i32) -> (i32, i32) {
    %c0_i32 = arith.constant 0 : i32
    %c0_i32_0 = arith.constant 0 : i32
    return %arg0, %c0_i32 : i32, i32
  }
}

</mosaic_0001>

<llo_original>
// kernel: tpu_custom_call.1
$region0: #{tpu_custom_call.1}
  #allocation0 [shape = 'u32[]', space=smem, size = 0x4, offset = 0x4, fixed_abs, tag = 'smem constant byte address 0x4 - core index']
  #allocation1 [shape = 'u32[144,128]{1,0:T(1,128)}', space=vmem, size = 0x12000, scoped, tag = 'internal scratch']
  #allocation2 [shape = 'f32[1]{0:T(128)S(6)}', space=smem, size = 0x200, scoped, tag = 'scoped memory for tpu_custom_call.1']
  %s0 = inlined_call_operand.<no memory space> [shape: f32[1], index: 0, kind: input, shape index: {}]
  %s1 = inlined_call_operand.vmem [shape: f32[8,32], index: 1, kind: input, shape index: {}]
  %s2 = inlined_call_operand.vmem [shape: f32[8,32], index: 2, kind: input, shape index: {}]
  %s3 = inlined_call_operand.hbm [shape: f32[8,16], index: 3, kind: input, shape index: {}]
  %s4 = inlined_call_operand.vmem [shape: f32[32,32], index: 4, kind: input, shape index: {}]
  %s5 = inlined_call_operand.vmem [shape: f32[1,32], index: 5, kind: input, shape index: {}]
  %s6 = inlined_call_operand.hbm [shape: f32[32,32], index: 6, kind: input, shape index: {}]
  %s7 = inlined_call_operand.vmem [shape: f32[1,32], index: 7, kind: input, shape index: {}]
  %s8 = inlined_call_operand.vmem [shape: f32[32,16], index: 8, kind: input, shape index: {}]
  %s9 = inlined_call_operand.vmem [shape: f32[1,32], index: 9, kind: input, shape index: {}]
  %s10 = inlined_call_operand.hbm [shape: bf16[8,32], index: 10, kind: output, shape index: {0}]
  %s11 = inlined_call_operand.hbm [shape: bf16[8,32], index: 11, kind: output, shape index: {1}]
  %s12 = inlined_call_operand.hbm [shape: bf16[8,32], index: 12, kind: output, shape index: {2}]
  %13 = xla_tuple %s10, %s11, %s12
  %s14 = sld [smem:[#allocation0]]
  $region74: #{tpu_custom_call.1} parent=0
    _
  %s16 = ssub.s32 1, %s14
  %s17 = scalar_select 0, %s16, %s14
  %18 = sst [smem:[#allocation2]] %s0
  $region1: #{tpu_custom_call.1} parent=0
    #allocation3 [shape = 'u8[4096]{0}', space=vmem, size = 0x1000, scoped, tag = 'input window, operand 3, single buffered']
    #allocation4 [shape = 's32[1]{0}', space=sflag, size = 0x4, scoped, tag = 'scoped memory for tpu_custom_call.1']
    #allocation5 [shape = 's32[1]{0}', space=sflag, size = 0x4, scoped, tag = 'scoped memory for tpu_custom_call.1']
    #allocation6 [shape = 'u8[16384]{0}', space=vmem, size = 0x4000, scoped, tag = 'input window, operand 6, single buffered']
    #allocation7 [shape = 's32[1]{0}', space=sflag, size = 0x4, scoped, tag = 'scoped memory for tpu_custom_call.1']
    #allocation8 [shape = 'u8[2048]{0}', space=vmem, size = 0x800, scoped, tag = 'output window, operand 0, single buffered']
    #allocation9 [shape = 'u8[2048]{0}', space=vmem, size = 0x800, scoped, tag = 'output window, operand 1, single buffered']
    #allocation10 [shape = 's32[1]{0}', space=sflag, size = 0x4, scoped, tag = 'scoped memory for tpu_custom_call.1']
    #allocation11 [shape = 'u8[2048]{0}', space=vmem, size = 0x800, scoped, tag = 'output window, operand 2, single buffered']
    %19 = vsyncpa [#allocation4], 0
    %20 = vsyncpa [#allocation7], 0
    %21 = vsyncpa [#allocation5], 0
    %22 = vsyncpa [#allocation10], 0
    // Predicated region
    $region2: #{tpu_custom_call.1} parent=1 // pred_check
      _
    $region3: #{tpu_custom_call.1} parent=1 // pred_check_branch
      %24 = sbr.rel (0) target = $region5
    $region4: #{tpu_custom_call.1} parent=1 // pred_region
      _
    $region5: #{tpu_custom_call.1} parent=1 // pred_fallthru
      _
    // Predicated region
    $region6: #{tpu_custom_call.1} parent=1 // pred_check
      _
    $region7: #{tpu_custom_call.1} parent=1 // pred_check_branch
      %26 = sbr.rel (0) target = $region9
    $region8: #{tpu_custom_call.1} parent=1 // pred_region
      _
    $region9: #{tpu_custom_call.1} parent=1 // pred_fallthru
      _
    // Predicated region
    $region10: #{tpu_custom_call.1} parent=1 // pred_check
      _
    $region11: #{tpu_custom_call.1} parent=1 // pred_check_branch
      %28 = sbr.rel (0) target = $region13
    $region12: #{tpu_custom_call.1} parent=1 // pred_region
      _
    $region13: #{tpu_custom_call.1} parent=1 // pred_fallthru
      _
    // Predicated region
    $region14: #{tpu_custom_call.1} parent=1 // pred_check
      _
    $region15: #{tpu_custom_call.1} parent=1 // pred_check_branch
      %30 = sbr.rel (0) target = $region17
    $region16: #{tpu_custom_call.1} parent=1 // pred_region
      %s32 = ssub.s32 128, 128
      %33 = vsyncadd [#allocation4], %s32
      %s35 = sshll.u32 [#allocation3], 4
      %s36 = int_to_ptr.vmem [resolvable:$true] %s35
      %38 = dma.hbm_to_vmem [thread:$0]  %s3, 128, %s36, [#allocation4]
    $region17: #{tpu_custom_call.1} parent=1 // pred_fallthru
      _
    // Predicated region
    $region18: #{tpu_custom_call.1} parent=1 // pred_check
      _
    $region19: #{tpu_custom_call.1} parent=1 // pred_check_branch
      %40 = sbr.rel (0) target = $region21
    $region20: #{tpu_custom_call.1} parent=1 // pred_region
      _
    $region21: #{tpu_custom_call.1} parent=1 // pred_fallthru
      _
    // Predicated region
    $region22: #{tpu_custom_call.1} parent=1 // pred_check
      _
    $region23: #{tpu_custom_call.1} parent=1 // pred_check_branch
      %42 = sbr.rel (0) target = $region25
    $region24: #{tpu_custom_call.1} parent=1 // pred_region
      _
    $region25: #{tpu_custom_call.1} parent=1 // pred_fallthru
      _
    // Predicated region
    $region26: #{tpu_custom_call.1} parent=1 // pred_check
      _
    $region27: #{tpu_custom_call.1} parent=1 // pred_check_branch
      %44 = sbr.rel (0) target = $region29
    $region28: #{tpu_custom_call.1} parent=1 // pred_region
      %s46 = ssub.s32 512, 512
      %47 = vsyncadd [#allocation7], %s46
      %s48 = sshll.u32 [#allocation6], 4
      %s49 = int_to_ptr.vmem [resolvable:$true] %s48
      %54 = dma.hbm_to_vmem [thread:$0]  %s6, 512, %s49, [#allocation7], 128, 128, 8
    $region29: #{tpu_custom_call.1} parent=1 // pred_fallthru
      _
    // Predicated region
    $region30: #{tpu_custom_call.1} parent=1 // pred_check
      _
    $region31: #{tpu_custom_call.1} parent=1 // pred_check_branch
      %56 = sbr.rel (0) target = $region33
    $region32: #{tpu_custom_call.1} parent=1 // pred_region
      _
    $region33: #{tpu_custom_call.1} parent=1 // pred_fallthru
      _
    // Predicated region
    $region34: #{tpu_custom_call.1} parent=1 // pred_check
      _
    $region35: #{tpu_custom_call.1} parent=1 // pred_check_branch
      %58 = sbr.rel (0) target = $region37
    $region36: #{tpu_custom_call.1} parent=1 // pred_region
      _
    $region37: #{tpu_custom_call.1} parent=1 // pred_fallthru
      _
    // Predicated region
    $region38: #{tpu_custom_call.1} parent=1 // pred_check
      _
    $region39: #{tpu_custom_call.1} parent=1 // pred_check_branch
      %60 = sbr.rel (0) target = $region41
    $region40: #{tpu_custom_call.1} parent=1 // pred_region
      _
    $region41: #{tpu_custom_call.1} parent=1 // pred_fallthru
      _
    // Predicated region
    $region42: #{tpu_custom_call.1} parent=1 // pred_check
      _
    $region43: #{tpu_custom_call.1} parent=1 // pred_check_branch
      %62 = sbr.rel (0) target = $region45
    $region44: #{tpu_custom_call.1} parent=1 // pred_region
      %63 = dma.done [#allocation4], 128
    $region45: #{tpu_custom_call.1} parent=1 // pred_fallthru
      _
    // Predicated region
    $region46: #{tpu_custom_call.1} parent=1 // pred_check
      _
    $region47: #{tpu_custom_call.1} parent=1 // pred_check_branch
      %65 = sbr.rel (0) target = $region49
    $region48: #{tpu_custom_call.1} parent=1 // pred_region
      %66 = dma.done [#allocation7], 512
    $region49: #{tpu_custom_call.1} parent=1 // pred_fallthru
      _
    %s67 = sld [smem:[#allocation2]]
    %v68 = vld [vmem:[%s1] sm:$0xff]
    %v69 = vld [vmem:[%s4] sm:$0xff]
    %v70 = vld [vmem:[%s4 + $0x8] sm:$0xff]
    %v71 = vld [vmem:[%s4 + $0x10] sm:$0xff]
    %v72 = vld [vmem:[%s4 + $0x18] sm:$0xff]
    %v73 = vld [vmem:[%s5] sm:$0x1]
    %v75 = vlaneseq
    %v76 = vshrl.u32 %v75, 7
    %v77 = vsub.s32 0, %v76
    %v78 = vrot.slane %v73, %v77
    %vm80 = vcmask 261120
    %v82 = vsel %vm80, %v68, 0
    %v85 = vsel %vm80, %v69, 0
    %v88 = vsel %vm80, %v70, 0
    %v91 = vsel %vm80, %v71, 0
    %v94 = vsel %vm80, %v72, 0
    %96 = vmatprep.subr.mxu0 0.0
    %97 = vmatpush1.xpose.msra.mxu0 0.0
    %98 = vmatprep.subr.mxu0 0.0
    %99 = vmatpush1.xpose.msra.mxu0 0.0
    %100 = vmatprep.subr.mxu0 0.0
    %101 = vmatpush1.xpose.msra.mxu0 0.0
    %102 = vmatprep.subr.mxu0 0.0
    %103 = vmatpush1.xpose.msra.mxu0 0.0
    %104 = vmatprep.subr.mxu0 0.0
    %105 = vmatpush1.xpose.msra.mxu0 0.0
    %106 = vmatprep.subr.mxu0 0.0
    %107 = vmatpush1.xpose.msra.mxu0 0.0
    %108 = vmatprep.subr.mxu0 0.0
    %109 = vmatpush1.xpose.msra.mxu0 0.0
    %110 = vmatprep.subr.mxu0 0.0
    %111 = vmatpush1.xpose.msra.mxu0 0.0
    %112 = vmatprep.subr.mxu0 0.0
    %113 = vmatpush1.xpose.msra.mxu0 0.0
    %114 = vmatprep.subr.mxu0 0.0
    %115 = vmatpush1.xpose.msra.mxu0 0.0
    %116 = vmatprep.subr.mxu0 0.0
    %117 = vmatpush1.xpose.msra.mxu0 0.0
    %118 = vmatprep.subr.mxu0 0.0
    %119 = vmatpush1.xpose.msra.mxu0 0.0
    %120 = vmatprep.subr.mxu0 0.0
    %121 = vmatpush1.xpose.msra.mxu0 %v94
    %122 = vmatprep.subr.mxu0 0.0
    %123 = vmatpush1.xpose.msra.mxu0 %v91
    %124 = vmatprep.subr.mxu0 0.0
    %125 = vmatpush1.xpose.msra.mxu0 %v88
    %126 = vmatprep.subr.mxu0 0.0
    %127 = vmatpush1.xpose.msra.mxu0 %v85
    %128 = vmatprep.subr.mxu0 0.0
    %129 = vmatpush2.xpose.msra.mxu0 0.0
    %130 = vmatprep.subr.mxu0 0.0
    %131 = vmatpush2.xpose.msra.mxu0 0.0
    %132 = vmatprep.subr.mxu0 0.0
    %133 = vmatpush2.xpose.msra.mxu0 0.0
    %134 = vmatprep.subr.mxu0 0.0
    %135 = vmatpush2.xpose.msra.mxu0 0.0
    %136 = vmatprep.subr.mxu0 0.0
    %137 = vmatpush2.xpose.msra.mxu0 0.0
    %138 = vmatprep.subr.mxu0 0.0
    %139 = vmatpush2.xpose.msra.mxu0 0.0
    %140 = vmatprep.subr.mxu0 0.0
    %141 = vmatpush2.xpose.msra.mxu0 0.0
    %142 = vmatprep.subr.mxu0 0.0
    %143 = vmatpush2.xpose.msra.mxu0 0.0
    %144 = vmatprep.subr.mxu0 0.0
    %145 = vmatpush2.xpose.msra.mxu0 0.0
    %146 = vmatprep.subr.mxu0 0.0
    %147 = vmatpush2.xpose.msra.mxu0 0.0
    %148 = vmatprep.subr.mxu0 0.0
    %149 = vmatpush2.xpose.msra.mxu0 0.0
    %150 = vmatprep.subr.mxu0 0.0
    %151 = vmatpush2.xpose.msra.mxu0 0.0
    %152 = vmatprep.subr.mxu0 0.0
    %153 = vmatpush2.xpose.msra.mxu0 0.0
    %154 = vmatprep.subr.mxu0 0.0
    %155 = vmatpush2.xpose.msra.mxu0 0.0
    %156 = vmatprep.subr.mxu0 0.0
    %157 = vmatpush2.xpose.msra.mxu0 0.0
    %158 = vmatprep.subr.mxu0 0.0
    %159 = vmatpush2.xpose.msra.mxu0 0.0
    %160 = vmatprep.mubr.f32.mxu0 0.0
    %161 = vmatmul.mubr.f32.gmra.mxu0 %v82
    %v162 = vpop.f32.mrf.mxu0
    %v163 = vadd.f32 %v78, %v162
    %v164 = vpop.f32.mrf.mxu0
    %165 = vdwg.mxu0
    %v166 = vmul.f32 %v163, %v163
    %v167 = vsel %vm80, %v166, 0.0
    %168 = vadd.xlane.f32.xlu0 %v167
    %v169 = vpop.xlane.xlu0 %168
    %v170 = vmax.f32 %v169, 1e-24
    %v171 = vrsqrt.pop %v170
    %v172 = vstv %s67
    %v173 = vmul.f32 %v171, %v172
    %v174 = vmul.f32 %v163, %v173
    %v175 = vpack.c.bf16 %v174, %v174
    %vm176 = vcmask 257024
    %177 = vst.msk [vmem:[#allocation8] sm:$0xf] %vm176, %v175
    %v178 = vld [vmem:[%s2] sm:$0xff]
    %v179 = vld [vmem:[#allocation6] sm:$0xff]
    %v180 = vld [vmem:[#allocation6 + $0x8] sm:$0xff]
    %v181 = vld [vmem:[#allocation6 + $0x10] sm:$0xff]
    %v182 = vld [vmem:[#allocation6 + $0x18] sm:$0xff]
    %v183 = vld [vmem:[%s7] sm:$0x1]
    %v185 = vlaneseq
    %v186 = vshrl.u32 %v185, 7
    %v187 = vsub.s32 0, %v186
    %v188 = vrot.slane %v183, %v187
    %v191 = vsel %vm80, %v178, 0
    %v194 = vsel %vm80, %v179, 0
    %v197 = vsel %vm80, %v180, 0
    %v200 = vsel %vm80, %v181, 0
    %v203 = vsel %vm80, %v182, 0
    %205 = vmatprep.subr.mxu0 0.0
    %206 = vmatpush1.xpose.msra.mxu0 0.0
    %207 = vmatprep.subr.mxu0 0.0
    %208 = vmatpush1.xpose.msra.mxu0 0.0
    %209 = vmatprep.subr.mxu0 0.0
    %210 = vmatpush1.xpose.msra.mxu0 0.0
    %211 = vmatprep.subr.mxu0 0.0
    %212 = vmatpush1.xpose.msra.mxu0 0.0
    %213 = vmatprep.subr.mxu0 0.0
    %214 = vmatpush1.xpose.msra.mxu0 0.0
    %215 = vmatprep.subr.mxu0 0.0
    %216 = vmatpush1.xpose.msra.mxu0 0.0
    %217 = vmatprep.subr.mxu0 0.0
    %218 = vmatpush1.xpose.msra.mxu0 0.0
    %219 = vmatprep.subr.mxu0 0.0
    %220 = vmatpush1.xpose.msra.mxu0 0.0
    %221 = vmatprep.subr.mxu0 0.0
    %222 = vmatpush1.xpose.msra.mxu0 0.0
    %223 = vmatprep.subr.mxu0 0.0
    %224 = vmatpush1.xpose.msra.mxu0 0.0
    %225 = vmatprep.subr.mxu0 0.0
    %226 = vmatpush1.xpose.msra.mxu0 0.0
    %227 = vmatprep.subr.mxu0 0.0
    %228 = vmatpush1.xpose.msra.mxu0 0.0
    %229 = vmatprep.subr.mxu0 0.0
    %230 = vmatpush1.xpose.msra.mxu0 %v203
    %231 = vmatprep.subr.mxu0 0.0
    %232 = vmatpush1.xpose.msra.mxu0 %v200
    %233 = vmatprep.subr.mxu0 0.0
    %234 = vmatpush1.xpose.msra.mxu0 %v197
    %235 = vmatprep.subr.mxu0 0.0
    %236 = vmatpush1.xpose.msra.mxu0 %v194
    %237 = vmatprep.subr.mxu0 0.0
    %238 = vmatpush2.xpose.msra.mxu0 0.0
    %239 = vmatprep.subr.mxu0 0.0
    %240 = vmatpush2.xpose.msra.mxu0 0.0
    %241 = vmatprep.subr.mxu0 0.0
    %242 = vmatpush2.xpose.msra.mxu0 0.0
    %243 = vmatprep.subr.mxu0 0.0
    %244 = vmatpush2.xpose.msra.mxu0 0.0
    %245 = vmatprep.subr.mxu0 0.0
    %246 = vmatpush2.xpose.msra.mxu0 0.0
    %247 = vmatprep.subr.mxu0 0.0
    %248 = vmatpush2.xpose.msra.mxu0 0.0
    %249 = vmatprep.subr.mxu0 0.0
    %250 = vmatpush2.xpose.msra.mxu0 0.0
    %251 = vmatprep.subr.mxu0 0.0
    %252 = vmatpush2.xpose.msra.mxu0 0.0
    %253 = vmatprep.subr.mxu0 0.0
    %254 = vmatpush2.xpose.msra.mxu0 0.0
    %255 = vmatprep.subr.mxu0 0.0
    %256 = vmatpush2.xpose.msra.mxu0 0.0
    %257 = vmatprep.subr.mxu0 0.0
    %258 = vmatpush2.xpose.msra.mxu0 0.0
    %259 = vmatprep.subr.mxu0 0.0
    %260 = vmatpush2.xpose.msra.mxu0 0.0
    %261 = vmatprep.subr.mxu0 0.0
    %262 = vmatpush2.xpose.msra.mxu0 0.0
    %263 = vmatprep.subr.mxu0 0.0
    %264 = vmatpush2.xpose.msra.mxu0 0.0
    %265 = vmatprep.subr.mxu0 0.0
    %266 = vmatpush2.xpose.msra.mxu0 0.0
    %267 = vmatprep.subr.mxu0 0.0
    %268 = vmatpush2.xpose.msra.mxu0 0.0
    %269 = vmatprep.mubr.f32.mxu0 0.0
    %270 = vmatmul.mubr.f32.gmra.mxu0 %v191
    %v271 = vpop.f32.mrf.mxu0
    %v272 = vadd.f32 %v188, %v271
    %v273 = vpop.f32.mrf.mxu0
    %274 = vdwg.mxu0
    %v275 = vmul.f32 %v272, %v272
    %v276 = vsel %vm80, %v275, 0.0
    %277 = vadd.xlane.f32.xlu0 %v276
    %v278 = vpop.xlane.xlu0 %277
    %v279 = vmax.f32 %v278, 1e-24
    %v280 = vrsqrt.pop %v279
    %v281 = vmul.f32 %v280, %v172
    %v282 = vmul.f32 %v272, %v281
    %v283 = vpack.c.bf16 %v282, %v282
    %284 = vst.msk [vmem:[#allocation9] sm:$0xf] %vm176, %v283
    %v285 = vld [vmem:[#allocation3] sm:$0xff]
    %v286 = vld [vmem:[%s8] sm:$0xff]
    %v287 = vld [vmem:[%s8 + $0x8] sm:$0xff]
    %v288 = vld [vmem:[%s8 + $0x10] sm:$0xff]
    %v289 = vld [vmem:[%s8 + $0x18] sm:$0xff]
    %v290 = vld [vmem:[%s9] sm:$0x1]
    %v292 = vlaneseq
    %v293 = vshrl.u32 %v292, 7
    %v294 = vsub.s32 0, %v293
    %v295 = vrot.slane %v290, %v294
    %vm297 = vcmask 130048
    %v299 = vsel %vm297, %v285, 0
    %v302 = vsel %vm297, %v286, 0
    %v305 = vsel %vm297, %v287, 0
    %v308 = vsel %vm297, %v288, 0
    %v311 = vsel %vm297, %v289, 0
    %313 = vmatprep.subr.mxu0 0.0
    %314 = vmatpush1.xpose.msra.mxu0 0.0
    %315 = vmatprep.subr.mxu0 0.0
    %316 = vmatpush1.xpose.msra.mxu0 0.0
    %317 = vmatprep.subr.mxu0 0.0
    %318 = vmatpush1.xpose.msra.mxu0 0.0
    %319 = vmatprep.subr.mxu0 0.0
    %320 = vmatpush1.xpose.msra.mxu0 0.0
    %321 = vmatprep.subr.mxu0 0.0
    %322 = vmatpush1.xpose.msra.mxu0 0.0
    %323 = vmatprep.subr.mxu0 0.0
    %324 = vmatpush1.xpose.msra.mxu0 0.0
    %325 = vmatprep.subr.mxu0 0.0
    %326 = vmatpush1.xpose.msra.mxu0 0.0
    %327 = vmatprep.subr.mxu0 0.0
    %328 = vmatpush1.xpose.msra.mxu0 0.0
    %329 = vmatprep.subr.mxu0 0.0
    %330 = vmatpush1.xpose.msra.mxu0 0.0
    %331 = vmatprep.subr.mxu0 0.0
    %332 = vmatpush1.xpose.msra.mxu0 0.0
    %333 = vmatprep.subr.mxu0 0.0
    %334 = vmatpush1.xpose.msra.mxu0 0.0
    %335 = vmatprep.subr.mxu0 0.0
    %336 = vmatpush1.xpose.msra.mxu0 0.0
    %337 = vmatprep.subr.mxu0 0.0
    %338 = vmatpush1.xpose.msra.mxu0 %v311
    %339 = vmatprep.subr.mxu0 0.0
    %340 = vmatpush1.xpose.msra.mxu0 %v308
    %341 = vmatprep.subr.mxu0 0.0
    %342 = vmatpush1.xpose.msra.mxu0 %v305
    %343 = vmatprep.subr.mxu0 0.0
    %344 = vmatpush1.xpose.msra.mxu0 %v302
    %345 = vmatprep.subr.mxu0 0.0
    %346 = vmatpush2.xpose.msra.mxu0 0.0
    %347 = vmatprep.subr.mxu0 0.0
    %348 = vmatpush2.xpose.msra.mxu0 0.0
    %349 = vmatprep.subr.mxu0 0.0
    %350 = vmatpush2.xpose.msra.mxu0 0.0
    %351 = vmatprep.subr.mxu0 0.0
    %352 = vmatpush2.xpose.msra.mxu0 0.0
    %353 = vmatprep.subr.mxu0 0.0
    %354 = vmatpush2.xpose.msra.mxu0 0.0
    %355 = vmatprep.subr.mxu0 0.0
    %356 = vmatpush2.xpose.msra.mxu0 0.0
    %357 = vmatprep.subr.mxu0 0.0
    %358 = vmatpush2.xpose.msra.mxu0 0.0
    %359 = vmatprep.subr.mxu0 0.0
    %360 = vmatpush2.xpose.msra.mxu0 0.0
    %361 = vmatprep.subr.mxu0 0.0
    %362 = vmatpush2.xpose.msra.mxu0 0.0
    %363 = vmatprep.subr.mxu0 0.0
    %364 = vmatpush2.xpose.msra.mxu0 0.0
    %365 = vmatprep.subr.mxu0 0.0
    %366 = vmatpush2.xpose.msra.mxu0 0.0
    %367 = vmatprep.subr.mxu0 0.0
    %368 = vmatpush2.xpose.msra.mxu0 0.0
    %369 = vmatprep.subr.mxu0 0.0
    %370 = vmatpush2.xpose.msra.mxu0 0.0
    %371 = vmatprep.subr.mxu0 0.0
    %372 = vmatpush2.xpose.msra.mxu0 0.0
    %373 = vmatprep.subr.mxu0 0.0
    %374 = vmatpush2.xpose.msra.mxu0 0.0
    %375 = vmatprep.subr.mxu0 0.0
    %376 = vmatpush2.xpose.msra.mxu0 0.0
    %377 = vmatprep.mubr.f32.mxu0 0.0
    %378 = vmatmul.mubr.f32.gmra.mxu0 %v299
    %v379 = vpop.f32.mrf.mxu0
    %v380 = vadd.f32 %v295, %v379
    %v381 = vpop.f32.mrf.mxu0
    %382 = vdwg.mxu0
    %v383 = vmul.f32 %v380, %v380
    %v384 = vsel %vm80, %v383, 0.0
    %385 = vadd.xlane.f32.xlu0 %v384
    %v386 = vpop.xlane.xlu0 %385
    %v387 = vmax.f32 %v386, 1e-24
    %v388 = vrsqrt.pop %v387
    %v389 = vmul.f32 %v388, %v172
    %v390 = vmul.f32 %v380, %v389
    %v391 = vpack.c.bf16 %v390, %v390
    %392 = vst.msk [vmem:[#allocation11] sm:$0xf] %vm176, %v391
    // Predicated region
    $region50: #{tpu_custom_call.1} parent=1 // pred_check
      _
    $region51: #{tpu_custom_call.1} parent=1 // pred_check_branch
      %394 = sbr.rel (0) target = $region53
    $region52: #{tpu_custom_call.1} parent=1 // pred_region
      %s396 = ssub.s32 64, 64
      %397 = vsyncadd [#allocation5], %s396
      %s399 = sshll.u32 [#allocation8], 4
      %s400 = int_to_ptr.vmem [resolvable:$true] %s399
      %402 = dma.vmem_to_hbm [thread:$0]  %s400, 64, %s10, [#allocation5]
    $region53: #{tpu_custom_call.1} parent=1 // pred_fallthru
      _
    // Predicated region
    $region54: #{tpu_custom_call.1} parent=1 // pred_check
      _
    $region55: #{tpu_custom_call.1} parent=1 // pred_check_branch
      %404 = sbr.rel (0) target = $region57
    $region56: #{tpu_custom_call.1} parent=1 // pred_region
      %s406 = ssub.s32 64, 64
      %407 = vsyncadd [#allocation10], %s406
      %s409 = sshll.u32 [#allocation9], 4
      %s410 = int_to_ptr.vmem [resolvable:$true] %s409
      %412 = dma.vmem_to_hbm [thread:$0]  %s410, 64, %s11, [#allocation10]
    $region57: #{tpu_custom_call.1} parent=1 // pred_fallthru
      _
    // Predicated region
    $region58: #{tpu_custom_call.1} parent=1 // pred_check
      _
    $region59: #{tpu_custom_call.1} parent=1 // pred_check_branch
      %414 = sbr.rel (0) target = $region61
    $region60: #{tpu_custom_call.1} parent=1 // pred_region
      %s416 = ssub.s32 64, 64
      %417 = vsyncadd [#allocation10], %s416
      %s419 = sshll.u32 [#allocation11], 4
      %s420 = int_to_ptr.vmem [resolvable:$true] %s419
      %422 = dma.vmem_to_hbm [thread:$0]  %s420, 64, %s12, [#allocation10]
    $region61: #{tpu_custom_call.1} parent=1 // pred_fallthru
      _
    // Predicated region
    $region62: #{tpu_custom_call.1} parent=1 // pred_check
      _
    $region63: #{tpu_custom_call.1} parent=1 // pred_check_branch
      %424 = sbr.rel (0) target = $region65
    $region64: #{tpu_custom_call.1} parent=1 // pred_region
      %425 = dma.done [#allocation5], 64
    $region65: #{tpu_custom_call.1} parent=1 // pred_fallthru
      _
    // Predicated region
    $region66: #{tpu_custom_call.1} parent=1 // pred_check
      _
    $region67: #{tpu_custom_call.1} parent=1 // pred_check_branch
      %427 = sbr.rel (0) target = $region69
    $region68: #{tpu_custom_call.1} parent=1 // pred_region
      %428 = dma.done [#allocation10], 64
    $region69: #{tpu_custom_call.1} parent=1 // pred_fallthru
      _
    // Predicated region
    $region70: #{tpu_custom_call.1} parent=1 // pred_check
      _
    $region71: #{tpu_custom_call.1} parent=1 // pred_check_branch
      %430 = sbr.rel (0) target = $region73
    $region72: #{tpu_custom_call.1} parent=1 // pred_region
      %431 = dma.done [#allocation10], 64
    $region73: #{tpu_custom_call.1} parent=1 // pred_fallthru
      _
    %432 = vsyncpa [#allocation4], 1
    %433 = vsyncpa [#allocation7], 1
    %434 = vsyncpa [#allocation5], 1
    %435 = vsyncpa [#allocation10], 1

</llo_original>
